<compile_context>
chip_gen: v6e
topology: v6e:2x2x1
jax: 0.10.0
libtpu: 0.0.40
codegen_flags: <defaults>
</compile_context>

<pallas_src>
import jax
import jax.numpy as jnp
from jax.experimental import pallas as pl
from jax.experimental.pallas import tpu as pltpu


def mlp2_kernel(xT_ref, w1_ref, b1_ref, w2_ref, b2_ref, oT_ref, h1_scratch):
    # Layer 1: h1^T = W1 @ x^T  (MXU, f32 accumulate), bias added in f32.
    h1 = jnp.dot(w1_ref[...], xT_ref[...], preferred_element_type=jnp.float32)
    h1_scratch[...] = h1 + b1_ref[...]          # stage intermediate in VMEM (f32)

    # Layer 2: y^T = W2 @ h1^T + b2. Cast the operand back to the compute dtype
    # (no-op for f32) so bf16 runs at full MXU rate on v6e/v7x; accumulate in f32.
    h2 = jnp.dot(w2_ref[...], h1_scratch[...].astype(w2_ref.dtype),
                 preferred_element_type=jnp.float32)
    oT_ref[...] = (h2 + b2_ref[...]).astype(oT_ref.dtype)


def _round_up(n, m):
    return ((n + m - 1) // m) * m


def simple2clcpnet_forward(x, params, *, tile_b=512, compute_dtype=None):
    """x: [B, D_in]. params: PyTorch-layout weights:
         w1: [H1, D_in], b1: [H1], w2: [D_out, H1], b2: [D_out].
       compute_dtype: optional (e.g. jnp.bfloat16) operand dtype for x / W1 / W2;
       accumulation and bias adds remain float32."""
    w1, b1, w2, b2 = params["w1"], params["b1"], params["w2"], params["b2"]
    B, D_in = x.shape
    H1 = w1.shape[0]
    D_out = w2.shape[0]

    cd = x.dtype if compute_dtype is None else compute_dtype

    # Batch lives on the lane axis: pick a lane-aligned tile (multiple of 128),
    # no larger than needed, and pad the batch up to a whole number of tiles.
    tb = max(128, min(tile_b, _round_up(B, 128)))
    Bp = _round_up(B, tb)

    xT = jnp.transpose(x).astype(cd)                      # (D_in, B)
    if Bp != B:
        xT = jnp.pad(xT, ((0, 0), (0, Bp - B)))           # zero-pad extra columns

    w1c = w1.astype(cd)
    w2c = w2.astype(cd)
    b1c = b1.reshape(H1, 1).astype(jnp.float32)           # column bias, lane-broadcast
    b2c = b2.reshape(D_out, 1).astype(jnp.float32)

    grid = (Bp // tb,)
    outT = pl.pallas_call(
        mlp2_kernel,
        out_shape=jax.ShapeDtypeStruct((D_out, Bp), x.dtype),
        grid_spec=pltpu.PrefetchScalarGridSpec(
            num_scalar_prefetch=0,
            grid=grid,
            in_specs=[
                # batch-tiled activations, lane-dense (tb % 128 == 0)
                pl.BlockSpec((D_in, tb), lambda i: (0, i)),
                # weights / biases: grid-invariant full blocks (constant index_map,
                # so they are not re-fetched per grid step; tiny -> no buffering tuning needed)
                pl.BlockSpec((H1, D_in), lambda i: (0, 0)),
                pl.BlockSpec((H1, 1), lambda i: (0, 0)),
                pl.BlockSpec((D_out, H1), lambda i: (0, 0)),
                pl.BlockSpec((D_out, 1), lambda i: (0, 0)),
            ],
            out_specs=pl.BlockSpec((D_out, tb), lambda i: (0, i)),
            scratch_shapes=[pltpu.VMEM((H1, tb), jnp.float32)],
        ),
        compiler_params=pltpu.CompilerParams(
            dimension_semantics=("parallel",)),
    )(xT, w1c, b1c, w2c, b2c)

    return jnp.transpose(outT)[:B]                        # back to (B, D_out)


def init_params(key, d_in, h1, d_out):
    """Deterministic init mimicking PyTorch Linear default (uniform +-1/sqrt(fan_in)).
    Weights stored in PyTorch layout [out, in]."""
    ks = jax.random.split(key, 4)

    def u(k, shape, fan_in):
        bound = 1.0 / jnp.sqrt(jnp.float32(fan_in))
        return jax.random.uniform(k, shape, jnp.float32, -bound, bound)

    return {
        "w1": u(ks[0], (h1, d_in), d_in),
        "b1": u(ks[1], (h1,), d_in),
        "w2": u(ks[2], (d_out, h1), h1),
        "b2": u(ks[3], (d_out,), h1),
    }


if __name__ == "__main__":
    # Shapes implied by the module: opt.model_in_dim=32, opt.model_n_hidden_1=64,
    # opt.model_out_dim=16. B=300 exercises padding (-> 384) and a multi-step grid.
    B, D_IN, H1, D_OUT = 300, 32, 64, 16

    key = jax.random.PRNGKey(0)
    kx, kp = jax.random.split(key)
    x = jax.random.normal(kx, (B, D_IN), dtype=jnp.float32)
    params = init_params(kp, D_IN, H1, D_OUT)

    out = simple2clcpnet_forward(x, params, tile_b=128)   # grid = (3,)
    out = jax.block_until_ready(out)

    # Plain-JAX reference (same semantics as the PyTorch forward: two Linears, no act).
    ref = x @ params["w1"].T + params["b1"]
    ref = ref @ params["w2"].T + params["b2"]

    assert out.shape == (B, D_OUT)
    assert jnp.allclose(out, ref, atol=1e-5, rtol=1e-5), "mismatch vs reference"
    print("KERNEL_OK")
</pallas_src>

<mosaic_0001>
module attributes {stable_mosaic.version = 11 : i64} {
  func.func @mlp2_kernel(%arg0: i32, %arg1: memref<32x128xf32, #tpu.memory_space<vmem>>, %arg2: memref<64x32xf32, #tpu.memory_space<vmem>>, %arg3: memref<64x1xf32, #tpu.memory_space<vmem>>, %arg4: memref<16x64xf32, #tpu.memory_space<vmem>>, %arg5: memref<16x1xf32, #tpu.memory_space<vmem>>, %arg6: memref<16x128xf32, #tpu.memory_space<vmem>>, %arg7: memref<64x128xf32, #tpu.memory_space<vmem>>) attributes {dimension_semantics = [#tpu.dimension_semantics<parallel>], iteration_bounds = array<i64: 3>, scalar_prefetch = 0 : i64, scratch_operands = 1 : i64, tpu.core_type = #tpu.core_type<tc>, window_params = [{transform_indices = @transform_0, window_bounds = array<i64: 32, 128>}, {pipeline_mode = #tpu.pipeline_mode<synchronous>, transform_indices = @transform_1, window_bounds = array<i64: 64, 32>}, {pipeline_mode = #tpu.pipeline_mode<synchronous>, transform_indices = @transform_2, window_bounds = array<i64: 64, 1>}, {pipeline_mode = #tpu.pipeline_mode<synchronous>, transform_indices = @transform_3, window_bounds = array<i64: 16, 64>}, {pipeline_mode = #tpu.pipeline_mode<synchronous>, transform_indices = @transform_4, window_bounds = array<i64: 16, 1>}, {transform_indices = @transform_5, window_bounds = array<i64: 16, 128>}]} {
    %c0 = arith.constant 0 : index
    %c0_0 = arith.constant 0 : index
    %0 = vector.load %arg2[%c0, %c0_0] : memref<64x32xf32, #tpu.memory_space<vmem>>, vector<64x32xf32>
    %c0_1 = arith.constant 0 : index
    %c0_2 = arith.constant 0 : index
    %1 = vector.load %arg1[%c0_1, %c0_2] : memref<32x128xf32, #tpu.memory_space<vmem>>, vector<32x128xf32>
    %cst = arith.constant dense<0.000000e+00> : vector<64x128xf32>
    %2 = tpu.matmul %0, %1, %cst {dimension_numbers = #tpu.dot_dimension_numbers<[1], [0], [0], [1], [0, 0, 1, 1], [], []>} : vector<64x32xf32>, vector<32x128xf32>, vector<64x128xf32> -> vector<64x128xf32>
    %c0_3 = arith.constant 0 : index
    %c0_4 = arith.constant 0 : index
    %3 = vector.load %arg3[%c0_3, %c0_4] : memref<64x1xf32, #tpu.memory_space<vmem>>, vector<64x1xf32>
    %4 = vector.broadcast %3 : vector<64x1xf32> to vector<64x128xf32>
    %5 = arith.addf %2, %4 : vector<64x128xf32>
    %c0_5 = arith.constant 0 : index
    %c0_6 = arith.constant 0 : index
    %6 = vector.load %arg7[%c0_5, %c0_6] : memref<64x128xf32, #tpu.memory_space<vmem>>, vector<64x128xf32>
    tpu.vector_store %arg7[%c0_5, %c0_6], %5 {strides = array<i32>} : memref<64x128xf32, #tpu.memory_space<vmem>>, vector<64x128xf32>,
    %c0_7 = arith.constant 0 : index
    %c0_8 = arith.constant 0 : index
    %7 = vector.load %arg4[%c0_7, %c0_8] : memref<16x64xf32, #tpu.memory_space<vmem>>, vector<16x64xf32>
    %c0_9 = arith.constant 0 : index
    %c0_10 = arith.constant 0 : index
    %8 = vector.load %arg7[%c0_9, %c0_10] : memref<64x128xf32, #tpu.memory_space<vmem>>, vector<64x128xf32>
    %cst_11 = arith.constant dense<0.000000e+00> : vector<16x128xf32>
    %9 = tpu.matmul %7, %8, %cst_11 {dimension_numbers = #tpu.dot_dimension_numbers<[1], [0], [0], [1], [0, 0, 1, 1], [], []>} : vector<16x64xf32>, vector<64x128xf32>, vector<16x128xf32> -> vector<16x128xf32>
    %c0_12 = arith.constant 0 : index
    %c0_13 = arith.constant 0 : index
    %10 = vector.load %arg5[%c0_12, %c0_13] : memref<16x1xf32, #tpu.memory_space<vmem>>, vector<16x1xf32>
    %11 = vector.broadcast %10 : vector<16x1xf32> to vector<16x128xf32>
    %12 = arith.addf %9, %11 : vector<16x128xf32>
    %c0_14 = arith.constant 0 : index
    %c0_15 = arith.constant 0 : index
    %13 = vector.load %arg6[%c0_14, %c0_15] : memref<16x128xf32, #tpu.memory_space<vmem>>, vector<16x128xf32>
    tpu.vector_store %arg6[%c0_14, %c0_15], %12 {strides = array<i32>} : memref<16x128xf32, #tpu.memory_space<vmem>>, vector<16x128xf32>,
    return
  }
  func.func @transform_0(%arg0: i32) -> (i32, i32) {
    %c0_i32 = arith.constant 0 : i32
    %c0_i32_0 = arith.constant 0 : i32
    return %c0_i32, %arg0 : i32, i32
  }
  func.func @transform_1(%arg0: i32) -> (i32, i32) {
    %c0_i32 = arith.constant 0 : i32
    %c0_i32_0 = arith.constant 0 : i32
    %c0_i32_1 = arith.constant 0 : i32
    return %c0_i32, %c0_i32_0 : i32, i32
  }
  func.func @transform_2(%arg0: i32) -> (i32, i32) {
    %c0_i32 = arith.constant 0 : i32
    %c0_i32_0 = arith.constant 0 : i32
    %c0_i32_1 = arith.constant 0 : i32
    return %c0_i32, %c0_i32_0 : i32, i32
  }
  func.func @transform_3(%arg0: i32) -> (i32, i32) {
    %c0_i32 = arith.constant 0 : i32
    %c0_i32_0 = arith.constant 0 : i32
    %c0_i32_1 = arith.constant 0 : i32
    return %c0_i32, %c0_i32_0 : i32, i32
  }
  func.func @transform_4(%arg0: i32) -> (i32, i32) {
    %c0_i32 = arith.constant 0 : i32
    %c0_i32_0 = arith.constant 0 : i32
    %c0_i32_1 = arith.constant 0 : i32
    return %c0_i32, %c0_i32_0 : i32, i32
  }
  func.func @transform_5(%arg0: i32) -> (i32, i32) {
    %c0_i32 = arith.constant 0 : i32
    %c0_i32_0 = arith.constant 0 : i32
    return %c0_i32, %arg0 : i32, i32
  }
}

</mosaic_0001>

<llo_original>
// kernel: tpu_custom_call.1
$region0: #{tpu_custom_call.1}
  #allocation0 [shape = 'u32[]', space=smem, size = 0x4, offset = 0x4, fixed_abs, tag = 'smem constant byte address 0x4 - core index']
  #allocation1 [shape = 'u32[144,128]{1,0:T(1,128)}', space=vmem, size = 0x12000, scoped, tag = 'internal scratch']
  #allocation2 [shape = 'f32[64,128]{1,0:T(8,128)}', space=vmem, size = 0x8000, scoped, tag = 'scratch operand']
  %s0 = inlined_call_operand.vmem [shape: f32[32,384], index: 0, kind: input, shape index: {}]
  %s1 = inlined_call_operand.vmem [shape: f32[64,32], index: 1, kind: input, shape index: {}]
  %s2 = inlined_call_operand.vmem [shape: f32[64,1], index: 2, kind: input, shape index: {}]
  %s3 = inlined_call_operand.vmem [shape: f32[16,64], index: 3, kind: input, shape index: {}]
  %s4 = inlined_call_operand.vmem [shape: f32[16,1], index: 4, kind: input, shape index: {}]
  %s5 = inlined_call_operand.hbm [shape: f32[16,384], index: 5, kind: output, shape index: {}]
  %s6 = sld [smem:[#allocation0]]
  $region91: #{tpu_custom_call.1} parent=0
    _
  %s8 = ssub.s32 1, %s6
  %s9 = scalar_select 0, %s8, %s6
  $region1: #{tpu_custom_call.1} parent=0
    #allocation3 [shape = 'u8[32768]{0}', space=vmem, size = 0x8000, scoped, tag = 'input window, operand 0']
    #allocation4 [shape = 'u8[16384]{0}', space=vmem, size = 0x4000, scoped, tag = 'output window, operand 0']
    #allocation5 [shape = 's32[2]{0}', space=sflag, size = 0x8, scoped, tag = 'scoped memory for tpu_custom_call.1']
    %10 = vsyncpa [#allocation5], 0
    %s11 = scalar_lea.sflag [#allocation5], 1
    %12 = vsyncpa %s11, 0
    loop: start=0, step=1, limit=5
    $region2: #{tpu_custom_call.1} parent=1 // loop_pre_header
      _
    $region3: #{tpu_custom_call.1} parent=1 // loop_header
      %s14 = sphi 0, %s18
      %p15 = scmp.ge.s32.totalorder %s14, 5
      %s24 = sphi 0, %s26
      %s27 = sphi 0, %s24
      %s28 = sphi 0, %s27
      %s44 = sphi 0, %s28
      %s48 = sphi 0, %s48
      %s50 = sphi 0, %s48
      %s51 = sphi 0, %s50
      %s65 = sphi 0, %s51
      %s69 = sphi 0, %s69
      %s71 = sphi 0, %s69
      %s72 = sphi 0, %s71
      %s86 = sphi 0, %s72
      %s90 = sphi 0, %s90
      %s92 = sphi 0, %s90
      %s93 = sphi 0, %s92
      %s107 = sphi 0, %s93
      %s111 = sphi 0, %s111
      %s113 = sphi 0, %s111
      %s114 = sphi 0, %s113
      %s128 = sphi 0, %s114
      %s134 = sphi 0, %s136
      %s137 = sphi 0, %s134
      %s138 = sphi 0, %s137
      %s154 = sphi 0, %s138
    $region4: #{tpu_custom_call.1} parent=1 // loop_header_branch
      %17 = sbr.rel (%p15) target = $region8
    $region5: #{tpu_custom_call.1} parent=1 // loop_body
      %s19 = ssub.s32 %s14, 1
      %s20 = ssub.s32 %s14, 2
      %s21 = sadd.s32 %s14, 1
      %s22 = ssub.s32 %s14, %s21
      %p23 = scmp.eq.s32.totalorder %s22, 0
      %s25 = sadd.s32 %s24, 1
      %s26 = scalar_select %p23, %s24, %s25
      %p29 = pneg %p23
      %p30 = scmp.eq.s32.totalorder %s14, 2
      %p31 = por %p29, %p30
      %p32 = scmp.ne.s32.totalorder %s24, %s27
      %p33 = scmp.eq.s32.totalorder %s14, 0
      %p34 = por %p32, %p33
      %p35 = scmp.ne.s32.totalorder %s24, %s27
      %p36 = scmp.eq.s32.totalorder %s19, 2
      %p37 = por %p35, %p36
      %p38 = scmp.ne.s32.totalorder %s27, %s28
      %p39 = scmp.eq.s32.totalorder %s19, 0
      %p40 = por %p38, %p39
      %p41 = scmp.ne.s32.totalorder %s27, %s28
      %p42 = scmp.eq.s32.totalorder %s20, 2
      %p43 = por %p41, %p42
      %p45 = scmp.ne.s32.totalorder %s28, %s44
      %p46 = scmp.eq.s32.totalorder %s20, 0
      %p47 = por %p45, %p46
      %s49 = sadd.s32 %s48, 1
      %p52 = scmp.eq.s32.totalorder %s14, 2
      %p53 = scmp.ne.s32.totalorder %s48, %s50
      %p54 = scmp.eq.s32.totalorder %s14, 0
      %p55 = por %p53, %p54
      %p56 = scmp.ne.s32.totalorder %s48, %s50
      %p57 = scmp.eq.s32.totalorder %s19, 2
      %p58 = por %p56, %p57
      %p59 = scmp.ne.s32.totalorder %s50, %s51
      %p60 = scmp.eq.s32.totalorder %s19, 0
      %p61 = por %p59, %p60
      %p62 = scmp.ne.s32.totalorder %s50, %s51
      %p63 = scmp.eq.s32.totalorder %s20, 2
      %p64 = por %p62, %p63
      %p66 = scmp.ne.s32.totalorder %s51, %s65
      %p67 = scmp.eq.s32.totalorder %s20, 0
      %p68 = por %p66, %p67
      %s70 = sadd.s32 %s69, 1
      %p73 = scmp.eq.s32.totalorder %s14, 2
      %p74 = scmp.ne.s32.totalorder %s69, %s71
      %p75 = scmp.eq.s32.totalorder %s14, 0
      %p76 = por %p74, %p75
      %p77 = scmp.ne.s32.totalorder %s69, %s71
      %p78 = scmp.eq.s32.totalorder %s19, 2
      %p79 = por %p77, %p78
      %p80 = scmp.ne.s32.totalorder %s71, %s72
      %p81 = scmp.eq.s32.totalorder %s19, 0
      %p82 = por %p80, %p81
      %p83 = scmp.ne.s32.totalorder %s71, %s72
      %p84 = scmp.eq.s32.totalorder %s20, 2
      %p85 = por %p83, %p84
      %p87 = scmp.ne.s32.totalorder %s72, %s86
      %p88 = scmp.eq.s32.totalorder %s20, 0
      %p89 = por %p87, %p88
      %s91 = sadd.s32 %s90, 1
      %p94 = scmp.eq.s32.totalorder %s14, 2
      %p95 = scmp.ne.s32.totalorder %s90, %s92
      %p96 = scmp.eq.s32.totalorder %s14, 0
      %p97 = por %p95, %p96
      %p98 = scmp.ne.s32.totalorder %s90, %s92
      %p99 = scmp.eq.s32.totalorder %s19, 2
      %p100 = por %p98, %p99
      %p101 = scmp.ne.s32.totalorder %s92, %s93
      %p102 = scmp.eq.s32.totalorder %s19, 0
      %p103 = por %p101, %p102
      %p104 = scmp.ne.s32.totalorder %s92, %s93
      %p105 = scmp.eq.s32.totalorder %s20, 2
      %p106 = por %p104, %p105
      %p108 = scmp.ne.s32.totalorder %s93, %s107
      %p109 = scmp.eq.s32.totalorder %s20, 0
      %p110 = por %p108, %p109
      %s112 = sadd.s32 %s111, 1
      %p115 = scmp.eq.s32.totalorder %s14, 2
      %p116 = scmp.ne.s32.totalorder %s111, %s113
      %p117 = scmp.eq.s32.totalorder %s14, 0
      %p118 = por %p116, %p117
      %p119 = scmp.ne.s32.totalorder %s111, %s113
      %p120 = scmp.eq.s32.totalorder %s19, 2
      %p121 = por %p119, %p120
      %p122 = scmp.ne.s32.totalorder %s113, %s114
      %p123 = scmp.eq.s32.totalorder %s19, 0
      %p124 = por %p122, %p123
      %p125 = scmp.ne.s32.totalorder %s113, %s114
      %p126 = scmp.eq.s32.totalorder %s20, 2
      %p127 = por %p125, %p126
      %p129 = scmp.ne.s32.totalorder %s114, %s128
      %p130 = scmp.eq.s32.totalorder %s20, 0
      %p131 = por %p129, %p130
      %s132 = ssub.s32 %s14, %s21
      %p133 = scmp.eq.s32.totalorder %s132, 0
      %s135 = sadd.s32 %s134, 1
      %s136 = scalar_select %p133, %s134, %s135
      %p139 = pneg %p133
      %p140 = scmp.eq.s32.totalorder %s14, 2
      %p141 = por %p139, %p140
      %p142 = scmp.ne.s32.totalorder %s134, %s137
      %p143 = scmp.eq.s32.totalorder %s14, 0
      %p144 = por %p142, %p143
      %p145 = scmp.ne.s32.totalorder %s134, %s137
      %p146 = scmp.eq.s32.totalorder %s19, 2
      %p147 = por %p145, %p146
      %p148 = scmp.ne.s32.totalorder %s137, %s138
      %p149 = scmp.eq.s32.totalorder %s19, 0
      %p150 = por %p148, %p149
      %p151 = scmp.ne.s32.totalorder %s137, %s138
      %p152 = scmp.eq.s32.totalorder %s20, 2
      %p153 = por %p151, %p152
      %p155 = scmp.ne.s32.totalorder %s138, %s154
      %p156 = scmp.eq.s32.totalorder %s20, 0
      %p157 = por %p155, %p156
      %p158 = scmp.le.s32.totalorder 1, %s14
      %p159 = scmp.lt.s32.totalorder %s14, 4
      %p160 = pnand %p158, %p159
      %p161 = pneg %p160
      // Predicated region
      $region9: #{tpu_custom_call.1} parent=5 // pred_check
        _
      $region10: #{tpu_custom_call.1} parent=5 // pred_check_branch
        %163 = sbr.rel (%p160) target = $region12
      $region11: #{tpu_custom_call.1} parent=5 // pred_region
        %s164 = ssub.s32 %s14, 1
        // Predicated region
        $region13: #{tpu_custom_call.1} parent=11 // pred_check
          %p165 = pneg %p61
        $region14: #{tpu_custom_call.1} parent=11 // pred_check_branch
          %167 = sbr.rel (%p165) target = $region16
        $region15: #{tpu_custom_call.1} parent=11 // pred_region
          _
        $region16: #{tpu_custom_call.1} parent=11 // pred_fallthru
          _
        // Predicated region
        $region17: #{tpu_custom_call.1} parent=11 // pred_check
          %p168 = pneg %p82
        $region18: #{tpu_custom_call.1} parent=11 // pred_check_branch
          %170 = sbr.rel (%p168) target = $region20
        $region19: #{tpu_custom_call.1} parent=11 // pred_region
          _
        $region20: #{tpu_custom_call.1} parent=11 // pred_fallthru
          _
        // Predicated region
        $region21: #{tpu_custom_call.1} parent=11 // pred_check
          %p171 = pneg %p103
        $region22: #{tpu_custom_call.1} parent=11 // pred_check_branch
          %173 = sbr.rel (%p171) target = $region24
        $region23: #{tpu_custom_call.1} parent=11 // pred_region
          _
        $region24: #{tpu_custom_call.1} parent=11 // pred_fallthru
          _
        // Predicated region
        $region25: #{tpu_custom_call.1} parent=11 // pred_check
          %p174 = pneg %p124
        $region26: #{tpu_custom_call.1} parent=11 // pred_check_branch
          %176 = sbr.rel (%p174) target = $region28
        $region27: #{tpu_custom_call.1} parent=11 // pred_region
          _
        $region28: #{tpu_custom_call.1} parent=11 // pred_fallthru
          _
      $region12: #{tpu_custom_call.1} parent=5 // pred_fallthru
        _
      %p177 = scmp.lt.s32.totalorder %s14, 3
      // Predicated region
      $region29: #{tpu_custom_call.1} parent=5 // pred_check
        %p178 = pneg %p177
      $region30: #{tpu_custom_call.1} parent=5 // pred_check_branch
        %180 = sbr.rel (%p178) target = $region32
      $region31: #{tpu_custom_call.1} parent=5 // pred_region
        // Predicated region
        $region33: #{tpu_custom_call.1} parent=31 // pred_check
          %p181 = pneg %p34
        $region34: #{tpu_custom_call.1} parent=31 // pred_check_branch
          %183 = sbr.rel (%p181) target = $region36
        $region35: #{tpu_custom_call.1} parent=31 // pred_region
          %s184 = sand.u32 %s24, 1
          %s185 = sand.u32 %s24, 1
          %s186 = smul.addr %s185, 32
          %s187 = scalar_lea.vmem [#allocation3], %s186
          %s188 = smul.addr %s14, 8
          %s189 = scalar_lea.vmem %s0, %s188
          // Predicated region
          $region37: #{tpu_custom_call.1} parent=35 // pred_check
            _
          $region38: #{tpu_custom_call.1} parent=35 // pred_check_branch
            %191 = sbr.rel (0) target = $region40
          $region39: #{tpu_custom_call.1} parent=35 // pred_region
            // Predicated region
            $region41: #{tpu_custom_call.1} parent=39 // pred_check
              _
            $region42: #{tpu_custom_call.1} parent=39 // pred_check_branch
              %193 = sbr.rel (0) target = $region44
            $region43: #{tpu_custom_call.1} parent=39 // pred_region
              // Predicated region
              $region56: #{tpu_custom_call.1} parent=43 // pred_check
                _
              $region57: #{tpu_custom_call.1} parent=43 // pred_check_branch
                %215 = sbr.rel (0) target = $region59
              $region58: #{tpu_custom_call.1} parent=43 // pred_region
                loop: start=0, step=1, limit=1
                $region60: #{tpu_custom_call.1} parent=58 // loop_pre_header
                  _
                $region61: #{tpu_custom_call.1} parent=58 // loop_header
                  %s217 = sphi 0, %s221
                  %p218 = scmp.ge.s32.totalorder %s217, 1
                  %s222 = sphi %s189, %s189
                  %s223 = sphi %s187, %s187
                $region62: #{tpu_custom_call.1} parent=58 // loop_header_branch
                  %220 = sbr.rel (%p218) target = $region66
                $region63: #{tpu_custom_call.1} parent=58 // loop_body
                  %v224 = vld [vmem:[%s222] sm:$0xff]
                  %225 = vst [vmem:[%s223] sm:$0xff] %v224
                  %v226 = vld [vmem:[%s222 + $0x18] sm:$0xff]
                  %227 = vst [vmem:[%s223 + $0x8] sm:$0xff] %v226
                  %v228 = vld [vmem:[%s222 + $0x30] sm:$0xff]
                  %229 = vst [vmem:[%s223 + $0x10] sm:$0xff] %v228
                  %v230 = vld [vmem:[%s222 + $0x48] sm:$0xff]
                  %231 = vst [vmem:[%s223 + $0x18] sm:$0xff] %v230
                $region64: #{tpu_custom_call.1} parent=58 // loop_footer
                  %s221 = sadd.s32 1, %s217
                $region65: #{tpu_custom_call.1} parent=58 // loop_footer_branch
                  %216 = sbr.rel target = $region61
                $region66: #{tpu_custom_call.1} parent=58 // loop_exit
                  _
              $region59: #{tpu_custom_call.1} parent=43 // pred_fallthru
                _
              // Predicated region
              $region67: #{tpu_custom_call.1} parent=43 // pred_check
                _
              $region68: #{tpu_custom_call.1} parent=43 // pred_check_branch
                %233 = sbr.rel target = $region70
              $region69: #{tpu_custom_call.1} parent=43 // pred_region
                _
              $region70: #{tpu_custom_call.1} parent=43 // pred_fallthru
                _
            $region44: #{tpu_custom_call.1} parent=39 // pred_fallthru
              _
            // Predicated region
            $region45: #{tpu_custom_call.1} parent=39 // pred_check
              _
            $region46: #{tpu_custom_call.1} parent=39 // pred_check_branch
              %195 = sbr.rel target = $region48
            $region47: #{tpu_custom_call.1} parent=39 // pred_region
              %s197 = ssub.s32 256, 1
              loop: start=0, step=1, limit=1
              $region49: #{tpu_custom_call.1} parent=47 // loop_pre_header
                _
              $region50: #{tpu_custom_call.1} parent=47 // loop_header
                %s199 = sphi 0, %s203
                %p200 = scmp.ge.s32.totalorder %s199, 1
                %s204 = sphi %s189, %s189
                %s205 = sphi %s187, %s187
              $region51: #{tpu_custom_call.1} parent=47 // loop_header_branch
                %202 = sbr.rel (%p200) target = $region55
              $region52: #{tpu_custom_call.1} parent=47 // loop_body
                %v206 = vld [vmem:[%s204] sm:%s197]
                %207 = vst [vmem:[%s205] sm:%s197] %v206
                %v208 = vld [vmem:[%s204 + $0x18] sm:%s197]
                %209 = vst [vmem:[%s205 + $0x8] sm:%s197] %v208
                %v210 = vld [vmem:[%s204 + $0x30] sm:%s197]
                %211 = vst [vmem:[%s205 + $0x10] sm:%s197] %v210
                %v212 = vld [vmem:[%s204 + $0x48] sm:%s197]
                %213 = vst [vmem:[%s205 + $0x18] sm:%s197] %v212
              $region53: #{tpu_custom_call.1} parent=47 // loop_footer
                %s203 = sadd.s32 1, %s199
              $region54: #{tpu_custom_call.1} parent=47 // loop_footer_branch
                %198 = sbr.rel target = $region50
              $region55: #{tpu_custom_call.1} parent=47 // loop_exit
                _
            $region48: #{tpu_custom_call.1} parent=39 // pred_fallthru
              _
          $region40: #{tpu_custom_call.1} parent=35 // pred_fallthru
            _
          %234 = vnop
        $region36: #{tpu_custom_call.1} parent=31 // pred_fallthru
          _
      $region32: #{tpu_custom_call.1} parent=5 // pred_fallthru
        _
      %p235 = scmp.le.s32.totalorder 1, %s14
      %p236 = scmp.lt.s32.totalorder %s14, 4
      %p237 = pnand %p235, %p236
      %p238 = pneg %p237
      // Predicated region
      $region71: #{tpu_custom_call.1} parent=5 // pred_check
        _
      $region72: #{tpu_custom_call.1} parent=5 // pred_check_branch
        %240 = sbr.rel (%p237) target = $region74
      $region73: #{tpu_custom_call.1} parent=5 // pred_region
        %s241 = ssub.s32 %s14, 1
        %s242 = sand.u32 %s27, 1
        %s243 = sand.u32 %s27, 1
        %s244 = smul.addr %s243, 32
        %s245 = scalar_lea.vmem [#allocation3], %s244
        // Predicated region
        $region75: #{tpu_custom_call.1} parent=73 // pred_check
          %p246 = pneg %p40
        $region76: #{tpu_custom_call.1} parent=73 // pred_check_branch
          %248 = sbr.rel (%p246) target = $region78
        $region77: #{tpu_custom_call.1} parent=73 // pred_region
          _
        $region78: #{tpu_custom_call.1} parent=73 // pred_fallthru
          _
        %s249 = sand.u32 %s27, 1
        %s250 = sand.u32 %s27, 1
        %s251 = smul.addr %s250, 32
        %s252 = scalar_lea.vmem [#allocation3], %s251
        %p253 = pneg %p40
        %p254 = pneg %p37
        %p255 = pneg %p61
        %p256 = pneg %p58
        %p257 = pneg %p82
        %p258 = pneg %p79
        %p259 = pneg %p103
        %p260 = pneg %p100
        %p261 = pneg %p124
        %p262 = pneg %p121
        %p263 = pneg %p150
        %p264 = pneg %p147
        %s265 = sand.u32 %s137, 1
        %s266 = scalar_lea.sflag [#allocation5], %s265
        %s267 = sand.u32 %s137, 1
        %s268 = smul.addr %s267, 16
        %s269 = scalar_lea.vmem [#allocation4], %s268
        %v270 = vld [vmem:[%s1] sm:$0xff]
        %v271 = vld [vmem:[%s1 + $0x8] sm:$0xff]
        %v272 = vld [vmem:[%s1 + $0x10] sm:$0xff]
        %v273 = vld [vmem:[%s1 + $0x18] sm:$0xff]
        %v274 = vld [vmem:[%s1 + $0x20] sm:$0xff]
        %v275 = vld [vmem:[%s1 + $0x28] sm:$0xff]
        %v276 = vld [vmem:[%s1 + $0x30] sm:$0xff]
        %v277 = vld [vmem:[%s1 + $0x38] sm:$0xff]
        %v278 = vld [vmem:[%s245] sm:$0xff]
        %v279 = vld [vmem:[%s245 + $0x8] sm:$0xff]
        %v280 = vld [vmem:[%s245 + $0x10] sm:$0xff]
        %v281 = vld [vmem:[%s245 + $0x18] sm:$0xff]
        %v282 = vld [vmem:[%s2] sm:$0xff]
        %v283 = vld [vmem:[%s2 + $0x8] sm:$0xff]
        %v284 = vld [vmem:[%s2 + $0x10] sm:$0xff]
        %v285 = vld [vmem:[%s2 + $0x18] sm:$0xff]
        %v286 = vld [vmem:[%s2 + $0x20] sm:$0xff]
        %v287 = vld [vmem:[%s2 + $0x28] sm:$0xff]
        %v288 = vld [vmem:[%s2 + $0x30] sm:$0xff]
        %v289 = vld [vmem:[%s2 + $0x38] sm:$0xff]
        %291 = vset.pattern.permute.xlu0 0
        %292 = vperm.xlu0 %291, %v282
        %v293 = vpop.permute.xlu0 %292
        %296 = vset.pattern.permute.xlu0 0
        %297 = vperm.xlu0 %296, %v283
        %v298 = vpop.permute.xlu0 %297
        %301 = vset.pattern.permute.xlu0 0
        %302 = vperm.xlu0 %301, %v284
        %v303 = vpop.permute.xlu0 %302
        %306 = vset.pattern.permute.xlu0 0
        %307 = vperm.xlu0 %306, %v285
        %v308 = vpop.permute.xlu0 %307
        %311 = vset.pattern.permute.xlu0 0
        %312 = vperm.xlu0 %311, %v286
        %v313 = vpop.permute.xlu0 %312
        %316 = vset.pattern.permute.xlu0 0
        %317 = vperm.xlu0 %316, %v287
        %v318 = vpop.permute.xlu0 %317
        %321 = vset.pattern.permute.xlu0 0
        %322 = vperm.xlu0 %321, %v288
        %v323 = vpop.permute.xlu0 %322
        %326 = vset.pattern.permute.xlu0 0
        %327 = vperm.xlu0 %326, %v289
        %v328 = vpop.permute.xlu0 %327
        %vm330 = vcmask 261120
        %v332 = vsel %vm330, %v270, 0
        %v335 = vsel %vm330, %v271, 0
        %v338 = vsel %vm330, %v272, 0
        %v341 = vsel %vm330, %v273, 0
        %v344 = vsel %vm330, %v274, 0
        %v347 = vsel %vm330, %v275, 0
        %v350 = vsel %vm330, %v276, 0
        %v353 = vsel %vm330, %v277, 0
        %355 = vmatprep.subr.mxu0 0.0
        %356 = vmatpush1.msra.mxu0 0.0
        %357 = vmatprep.subr.mxu0 0.0
        %358 = vmatpush1.msra.mxu0 0.0
        %359 = vmatprep.subr.mxu0 0.0
        %360 = vmatpush1.msra.mxu0 0.0
        %361 = vmatprep.subr.mxu0 0.0
        %362 = vmatpush1.msra.mxu0 0.0
        %363 = vmatprep.subr.mxu0 0.0
        %364 = vmatpush1.msra.mxu0 0.0
        %365 = vmatprep.subr.mxu0 0.0
        %366 = vmatpush1.msra.mxu0 0.0
        %367 = vmatprep.subr.mxu0 0.0
        %368 = vmatpush1.msra.mxu0 0.0
        %369 = vmatprep.subr.mxu0 0.0
        %370 = vmatpush1.msra.mxu0 0.0
        %371 = vmatprep.subr.mxu0 0.0
        %372 = vmatpush1.msra.mxu0 0.0
        %373 = vmatprep.subr.mxu0 0.0
        %374 = vmatpush1.msra.mxu0 0.0
        %375 = vmatprep.subr.mxu0 0.0
        %376 = vmatpush1.msra.mxu0 0.0
        %377 = vmatprep.subr.mxu0 0.0
        %378 = vmatpush1.msra.mxu0 0.0
        %379 = vmatprep.subr.mxu0 0.0
        %380 = vmatpush1.msra.mxu0 %v281
        %381 = vmatprep.subr.mxu0 0.0
        %382 = vmatpush1.msra.mxu0 %v280
        %383 = vmatprep.subr.mxu0 0.0
        %384 = vmatpush1.msra.mxu0 %v279
        %385 = vmatprep.subr.mxu0 0.0
        %386 = vmatpush1.msra.mxu0 %v278
        %387 = vmatprep.subr.mxu0 0.0
        %388 = vmatpush2.msra.mxu0 0.0
        %389 = vmatprep.subr.mxu0 0.0
        %390 = vmatpush2.msra.mxu0 0.0
        %391 = vmatprep.subr.mxu0 0.0
        %392 = vmatpush2.msra.mxu0 0.0
        %393 = vmatprep.subr.mxu0 0.0
        %394 = vmatpush2.msra.mxu0 0.0
        %395 = vmatprep.subr.mxu0 0.0
        %396 = vmatpush2.msra.mxu0 0.0
        %397 = vmatprep.subr.mxu0 0.0
        %398 = vmatpush2.msra.mxu0 0.0
        %399 = vmatprep.subr.mxu0 0.0
        %400 = vmatpush2.msra.mxu0 0.0
        %401 = vmatprep.subr.mxu0 0.0
        %402 = vmatpush2.msra.mxu0 0.0
        %403 = vmatprep.subr.mxu0 0.0
        %404 = vmatpush2.msra.mxu0 0.0
        %405 = vmatprep.subr.mxu0 0.0
        %406 = vmatpush2.msra.mxu0 0.0
        %407 = vmatprep.subr.mxu0 0.0
        %408 = vmatpush2.msra.mxu0 0.0
        %409 = vmatprep.subr.mxu0 0.0
        %410 = vmatpush2.msra.mxu0 0.0
        %411 = vmatprep.subr.mxu0 0.0
        %412 = vmatpush2.msra.mxu0 0.0
        %413 = vmatprep.subr.mxu0 0.0
        %414 = vmatpush2.msra.mxu0 0.0
        %415 = vmatprep.subr.mxu0 0.0
        %416 = vmatpush2.msra.mxu0 0.0
        %417 = vmatprep.subr.mxu0 0.0
        %418 = vmatpush2.msra.mxu0 0.0
        %419 = vmatprep.mubr.f32.mxu0 0.0
        %420 = vmatmul.mubr.f32.gmra.mxu0 %v332
        %v421 = vpop.f32.mrf.mxu0
        %v422 = vadd.f32 %v293, %v421
        %v423 = vpop.f32.mrf.mxu0
        %424 = vmatprep.mubr.f32.mxu0 0.0
        %425 = vmatmul.mubr.f32.gmra.mxu0 %v335
        %v426 = vpop.f32.mrf.mxu0
        %v427 = vadd.f32 %v298, %v426
        %v428 = vpop.f32.mrf.mxu0
        %429 = vmatprep.mubr.f32.mxu0 0.0
        %430 = vmatmul.mubr.f32.gmra.mxu0 %v338
        %v431 = vpop.f32.mrf.mxu0
        %v432 = vadd.f32 %v303, %v431
        %v433 = vpop.f32.mrf.mxu0
        %434 = vmatprep.mubr.f32.mxu0 0.0
        %435 = vmatmul.mubr.f32.gmra.mxu0 %v341
        %v436 = vpop.f32.mrf.mxu0
        %v437 = vadd.f32 %v308, %v436
        %v438 = vpop.f32.mrf.mxu0
        %439 = vmatprep.mubr.f32.mxu0 0.0
        %440 = vmatmul.mubr.f32.gmra.mxu0 %v344
        %v441 = vpop.f32.mrf.mxu0
        %v442 = vadd.f32 %v313, %v441
        %v443 = vpop.f32.mrf.mxu0
        %444 = vmatprep.mubr.f32.mxu0 0.0
        %445 = vmatmul.mubr.f32.gmra.mxu0 %v347
        %v446 = vpop.f32.mrf.mxu0
        %v447 = vadd.f32 %v318, %v446
        %v448 = vpop.f32.mrf.mxu0
        %449 = vmatprep.mubr.f32.mxu0 0.0
        %450 = vmatmul.mubr.f32.gmra.mxu0 %v350
        %v451 = vpop.f32.mrf.mxu0
        %v452 = vadd.f32 %v323, %v451
        %v453 = vpop.f32.mrf.mxu0
        %454 = vmatprep.mubr.f32.mxu0 0.0
        %455 = vmatmul.mubr.f32.gmra.mxu0 %v353
        %v456 = vpop.f32.mrf.mxu0
        %v457 = vadd.f32 %v328, %v456
        %v458 = vpop.f32.mrf.mxu0
        %459 = vdwg.mxu0
        %460 = vst [vmem:[#allocation2] sm:$0xff] %v422
        %461 = vst [vmem:[#allocation2 + $0x8] sm:$0xff] %v427
        %462 = vst [vmem:[#allocation2 + $0x10] sm:$0xff] %v432
        %463 = vst [vmem:[#allocation2 + $0x18] sm:$0xff] %v437
        %464 = vst [vmem:[#allocation2 + $0x20] sm:$0xff] %v442
        %465 = vst [vmem:[#allocation2 + $0x28] sm:$0xff] %v447
        %466 = vst [vmem:[#allocation2 + $0x30] sm:$0xff] %v452
        %467 = vst [vmem:[#allocation2 + $0x38] sm:$0xff] %v457
        %v468 = vld [vmem:[%s3] sm:$0xff]
        %v469 = vld [vmem:[%s3 + $0x8] sm:$0xff]
        %v470 = vld [vmem:[#allocation2] sm:$0xff]
        %v471 = vld [vmem:[#allocation2 + $0x8] sm:$0xff]
        %v472 = vld [vmem:[#allocation2 + $0x10] sm:$0xff]
        %v473 = vld [vmem:[#allocation2 + $0x18] sm:$0xff]
        %v474 = vld [vmem:[#allocation2 + $0x20] sm:$0xff]
        %v475 = vld [vmem:[#allocation2 + $0x28] sm:$0xff]
        %v476 = vld [vmem:[#allocation2 + $0x30] sm:$0xff]
        %v477 = vld [vmem:[#allocation2 + $0x38] sm:$0xff]
        %v478 = vld [vmem:[%s4] sm:$0xff]
        %v479 = vld [vmem:[%s4 + $0x8] sm:$0xff]
        %481 = vset.pattern.permute.xlu0 0
        %482 = vperm.xlu0 %481, %v478
        %v483 = vpop.permute.xlu0 %482
        %486 = vset.pattern.permute.xlu0 0
        %487 = vperm.xlu0 %486, %v479
        %v488 = vpop.permute.xlu0 %487
        %vm490 = vcmask 523264
        %v492 = vsel %vm490, %v468, 0
        %v495 = vsel %vm490, %v469, 0
        %497 = vmatprep.subr.mxu0 0.0
        %498 = vmatpush1.msra.mxu0 0.0
        %499 = vmatprep.subr.mxu0 0.0
        %500 = vmatpush1.msra.mxu0 0.0
        %501 = vmatprep.subr.mxu0 0.0
        %502 = vmatpush1.msra.mxu0 0.0
        %503 = vmatprep.subr.mxu0 0.0
        %504 = vmatpush1.msra.mxu0 0.0
        %505 = vmatprep.subr.mxu0 0.0
        %506 = vmatpush1.msra.mxu0 0.0
        %507 = vmatprep.subr.mxu0 0.0
        %508 = vmatpush1.msra.mxu0 0.0
        %509 = vmatprep.subr.mxu0 0.0
        %510 = vmatpush1.msra.mxu0 0.0
        %511 = vmatprep.subr.mxu0 0.0
        %512 = vmatpush1.msra.mxu0 0.0
        %513 = vmatprep.subr.mxu0 0.0
        %514 = vmatpush1.msra.mxu0 %v477
        %515 = vmatprep.subr.mxu0 0.0
        %516 = vmatpush1.msra.mxu0 %v476
        %517 = vmatprep.subr.mxu0 0.0
        %518 = vmatpush1.msra.mxu0 %v475
        %519 = vmatprep.subr.mxu0 0.0
        %520 = vmatpush1.msra.mxu0 %v474
        %521 = vmatprep.subr.mxu0 0.0
        %522 = vmatpush1.msra.mxu0 %v473
        %523 = vmatprep.subr.mxu0 0.0
        %524 = vmatpush1.msra.mxu0 %v472
        %525 = vmatprep.subr.mxu0 0.0
        %526 = vmatpush1.msra.mxu0 %v471
        %527 = vmatprep.subr.mxu0 0.0
        %528 = vmatpush1.msra.mxu0 %v470
        %529 = vmatprep.subr.mxu0 0.0
        %530 = vmatpush2.msra.mxu0 0.0
        %531 = vmatprep.subr.mxu0 0.0
        %532 = vmatpush2.msra.mxu0 0.0
        %533 = vmatprep.subr.mxu0 0.0
        %534 = vmatpush2.msra.mxu0 0.0
        %535 = vmatprep.subr.mxu0 0.0
        %536 = vmatpush2.msra.mxu0 0.0
        %537 = vmatprep.subr.mxu0 0.0
        %538 = vmatpush2.msra.mxu0 0.0
        %539 = vmatprep.subr.mxu0 0.0
        %540 = vmatpush2.msra.mxu0 0.0
        %541 = vmatprep.subr.mxu0 0.0
        %542 = vmatpush2.msra.mxu0 0.0
        %543 = vmatprep.subr.mxu0 0.0
        %544 = vmatpush2.msra.mxu0 0.0
        %545 = vmatprep.subr.mxu0 0.0
        %546 = vmatpush2.msra.mxu0 0.0
        %547 = vmatprep.subr.mxu0 0.0
        %548 = vmatpush2.msra.mxu0 0.0
        %549 = vmatprep.subr.mxu0 0.0
        %550 = vmatpush2.msra.mxu0 0.0
        %551 = vmatprep.subr.mxu0 0.0
        %552 = vmatpush2.msra.mxu0 0.0
        %553 = vmatprep.subr.mxu0 0.0
        %554 = vmatpush2.msra.mxu0 0.0
        %555 = vmatprep.subr.mxu0 0.0
        %556 = vmatpush2.msra.mxu0 0.0
        %557 = vmatprep.subr.mxu0 0.0
        %558 = vmatpush2.msra.mxu0 0.0
        %559 = vmatprep.subr.mxu0 0.0
        %560 = vmatpush2.msra.mxu0 0.0
        %561 = vmatprep.mubr.f32.mxu0 0.0
        %562 = vmatmul.mubr.f32.gmra.mxu0 %v492
        %v563 = vpop.f32.mrf.mxu0
        %v564 = vadd.f32 %v483, %v563
        %v565 = vpop.f32.mrf.mxu0
        %566 = vmatprep.mubr.f32.mxu0 0.0
        %567 = vmatmul.mubr.f32.gmra.mxu0 %v495
        %v568 = vpop.f32.mrf.mxu0
        %v569 = vadd.f32 %v488, %v568
        %v570 = vpop.f32.mrf.mxu0
        %571 = vdwg.mxu0
        %572 = vst [vmem:[%s269] sm:$0xff] %v564
        %573 = vst [vmem:[%s269 + $0x8] sm:$0xff] %v569
        %s574 = sand.u32 %s137, 1
        %s575 = scalar_lea.sflag [#allocation5], %s574
        %s576 = sand.u32 %s137, 1
        %s577 = smul.addr %s576, 16
        %s578 = scalar_lea.vmem [#allocation4], %s577
        // Predicated region
        $region79: #{tpu_custom_call.1} parent=73 // pred_check
          %p579 = pneg %p147
        $region80: #{tpu_custom_call.1} parent=73 // pred_check_branch
          %581 = sbr.rel (%p579) target = $region82
        $region81: #{tpu_custom_call.1} parent=73 // pred_region
          %s583 = ssub.s32 256, 256
          %584 = vsyncadd %s575, %s583
          %s585 = smul.addr %s19, 128
          %s586 = scalar_lea.hbm %s5, %s585
          %s587 = sshll.u32 %s578, 4
          %s588 = int_to_ptr.vmem [resolvable:$true] %s587
          %593 = dma.vmem_to_hbm [thread:$0]  %s588, 256, %s586, %s575, 128, 384, 8
        $region82: #{tpu_custom_call.1} parent=73 // pred_fallthru
          _
      $region74: #{tpu_custom_call.1} parent=5 // pred_fallthru
        _
      %p594 = scmp.le.s32.totalorder 2, %s14
      // Predicated region
      $region83: #{tpu_custom_call.1} parent=5 // pred_check
        %p595 = pneg %p594
      $region84: #{tpu_custom_call.1} parent=5 // pred_check_branch
        %597 = sbr.rel (%p595) target = $region86
      $region85: #{tpu_custom_call.1} parent=5 // pred_region
        %s598 = ssub.s32 %s14, 2
        // Predicated region
        $region87: #{tpu_custom_call.1} parent=85 // pred_check
          %p599 = pneg %p153
        $region88: #{tpu_custom_call.1} parent=85 // pred_check_branch
          %601 = sbr.rel (%p599) target = $region90
        $region89: #{tpu_custom_call.1} parent=85 // pred_region
          %s602 = sand.u32 %s138, 1
          %s603 = scalar_lea.sflag [#allocation5], %s602
          %s604 = sand.u32 %s138, 1
          %s605 = smul.addr %s604, 16
          %s606 = scalar_lea.vmem [#allocation4], %s605
          %607 = dma.done %s603, 256
        $region90: #{tpu_custom_call.1} parent=85 // pred_fallthru
          _
      $region86: #{tpu_custom_call.1} parent=5 // pred_fallthru
        _
    $region6: #{tpu_custom_call.1} parent=1 // loop_footer
      %s18 = sadd.s32 1, %s14
    $region7: #{tpu_custom_call.1} parent=1 // loop_footer_branch
      %13 = sbr.rel target = $region3
    $region8: #{tpu_custom_call.1} parent=1 // loop_exit
      _
    %608 = vsyncpa [#allocation5], 1
    %s609 = scalar_lea.sflag [#allocation5], 1
    %610 = vsyncpa %s609, 1

</llo_original>
